<compile_context>
chip_gen: v5e
topology: v5e:2x2
jax: 0.10.0
libtpu: 0.0.40
codegen_flags: <defaults>
</compile_context>

<pallas_src>
import functools

import jax
import jax.numpy as jnp
from jax import lax
from jax.experimental import pallas as pl
from jax.experimental.pallas import tpu as pltpu

LANES = 128               # vreg lane width
SUBLANES = 8              # vreg sublane count (f32)
CHUNK = 32                # rows per in-kernel chunk (multiple of 8)
TARGET_BLOCK_BYTES = 4 * 1024 * 1024   # per-input VMEM block target
PAD_TARGET = 2.0          # sentinel target for padded slots -> g ~ 1.5 -> no bin


def _num_tensorcores():
    """2 on v7x (two TensorCores per chip), 1 on single-TC v5e / v6e."""
    try:
        kind = jax.devices()[0].device_kind.lower()
    except Exception:
        return 1
    return 2 if "v7" in kind else 1


def _ghm_hist_kernel(x_ref, t_ref, cnt_ref, lsum_ref, *,
                     bins, block_rows, n_inner, rows):
    o = pl.program_id(0)      # 'parallel' axis (per-TensorCore partials)
    i = pl.program_id(1)      # 'arbitrary' (reduction) axis

    @pl.when(i == 0)
    def _():
        cnt_ref[...] = jnp.zeros_like(cnt_ref)
        lsum_ref[...] = jnp.zeros_like(lsum_ref)

    # Rows of this logical block that map to real data.  Overflow blocks of the
    # parallel split (the index_map clamps them onto the last real block) get
    # nvalid == 0; a ragged last block gets a partial count.
    blk = o * n_inner + i
    nvalid = jnp.clip(rows - blk * block_rows, 0, block_rows)

    n_chunks = block_rows // CHUNK                               # static
    rid = lax.broadcasted_iota(jnp.int32, (CHUNK, LANES), 0)     # loop-invariant
    scale = jnp.float32(bins - 0.0001)

    def chunk_body(c, carry):
        r0 = c * CHUNK
        x = x_ref[pl.ds(pl.multiple_of(r0, CHUNK), CHUNK), :].astype(jnp.float32)
        t = t_ref[pl.ds(pl.multiple_of(r0, CHUNK), CHUNK), :].astype(jnp.float32)

        # One exp feeds both sigmoid and BCE; the reciprocal uses the EUP slot.
        e = jnp.exp(-jnp.abs(x))
        r = pl.reciprocal(1.0 + e, approx=False)
        sig = jnp.where(x >= 0.0, r, e * r)                      # sigmoid(x)
        l = jnp.maximum(x, 0.0) - x * t + jnp.log1p(e)           # BCE-with-logits
        gs = jnp.abs(sig - t) * scale                            # _g2bin argument

        # Row-level validity only (no per-element global index).  Garbage
        # (possibly NaN) values from out-of-range block reads are discarded by
        # the jnp.where selects below, never by multiplication.
        valid = rid < (nvalid - r0)
        gs = jnp.where(valid, gs, -1.0)      # invalid rows match no threshold

        gs3 = gs.reshape(CHUNK // SUBLANES, SUBLANES, LANES)
        l3 = l.reshape(CHUNK // SUBLANES, SUBLANES, LANES)

        # Cumulative thresholds; per-bin values are recovered by differencing
        # in the wrapper.  Full-vreg (8,128) aligned RMW, once per threshold
        # per chunk.
        for k in range(bins + 1):
            m = gs3 >= jnp.float32(k)
            r8 = slice(k * SUBLANES, (k + 1) * SUBLANES)
            cnt_ref[r8, :] += jnp.sum(m.astype(jnp.float32), axis=0)
            lsum_ref[r8, :] += jnp.sum(jnp.where(m, l3, 0.0), axis=0)
        return carry

    lax.fori_loop(0, n_chunks, chunk_body, 0)


def ghm_c_loss(x, target, bins=10, alpha=0.5, last_bin_count=None):
    """Matches GHM_Loss(bins, alpha).forward(x, target) (GHM-C instantiation).

    Returns (loss, bin_count).  `bin_count` is what the PyTorch module stores
    in its `_last_bin_count` buffer; feed it back via `last_bin_count=` on the
    next call to reproduce the module's EMA behaviour.
    """
    assert x.shape == target.shape
    n = int(x.size)
    # TODO(synk): module uses N = x.size(0); some GHM variants use label count.
    N = x.shape[0]

    xf = x.reshape(-1)
    tf = target.reshape(-1)

    # Pad to a whole number of 32x128 chunks.  Pad slots use x=0, target=2 so
    # gs ~ 15 lies above every threshold and cancels out of every bin after the
    # cumulative sums are differenced.  At most 4095 extra elements.
    pad = (-n) % (CHUNK * LANES)
    if pad:
        xf = jnp.pad(xf, (0, pad))
        tf = jnp.pad(tf, (0, pad), constant_values=PAD_TARGET)
    rows = (n + pad) // LANES                     # multiple of CHUNK
    x2 = xf.reshape(rows, LANES)                  # lane-dense slabs, native dtype
    t2 = tf.reshape(rows, LANES)

    # Dtype-aware block height, capped by the VMEM budget and the data size.
    itemsize = max(x2.dtype.itemsize, t2.dtype.itemsize)
    tm = max(CHUNK, (TARGET_BLOCK_BYTES // (LANES * itemsize)) // CHUNK * CHUNK)

    # Split chunks evenly over TensorCores first (balanced, no duplicate work),
    # then into VMEM-sized blocks per core.
    n_chunks_total = rows // CHUNK
    n_outer = max(1, min(_num_tensorcores(), n_chunks_total))
    chunks_per_core = pl.cdiv(n_chunks_total, n_outer)
    n_inner = pl.cdiv(chunks_per_core, tm // CHUNK)
    chunks_per_block = pl.cdiv(chunks_per_core, n_inner)
    block_rows = chunks_per_block * CHUNK
    last_real_blk = pl.cdiv(rows, block_rows) - 1

    acc_rows = (bins + 1) * SUBLANES

    def in_map(o, i):
        # Overflow iterations of the parallel split re-read the last real
        # block; their contribution is zeroed by the in-kernel validity mask.
        return (jnp.minimum(o * n_inner + i, last_real_blk), 0)

    kernel = functools.partial(
        _ghm_hist_kernel, bins=bins, block_rows=block_rows,
        n_inner=n_inner, rows=rows)

    n_proc = n_outer * n_inner * block_rows * LANES
    cost = pl.CostEstimate(
        flops=60 * n_proc,
        transcendentals=3 * n_proc,
        bytes_accessed=int(x2.size * x2.dtype.itemsize
                           + t2.size * t2.dtype.itemsize
                           + 2 * n_outer * acc_rows * LANES * 4),
    )

    cnt, lsum = pl.pallas_call(
        kernel,
        out_shape=(
            jax.ShapeDtypeStruct((n_outer, acc_rows, LANES), jnp.float32),
            jax.ShapeDtypeStruct((n_outer, acc_rows, LANES), jnp.float32),
        ),
        grid_spec=pltpu.PrefetchScalarGridSpec(
            num_scalar_prefetch=0,
            grid=(n_outer, n_inner),
            in_specs=[
                pl.BlockSpec((block_rows, LANES), in_map),
                pl.BlockSpec((block_rows, LANES), in_map),
            ],
            out_specs=[
                pl.BlockSpec((None, acc_rows, LANES), lambda o, i: (o, 0, 0)),
                pl.BlockSpec((None, acc_rows, LANES), lambda o, i: (o, 0, 0)),
            ],
        ),
        compiler_params=pltpu.CompilerParams(
            dimension_semantics=("parallel", "arbitrary")),
        cost_estimate=cost,
    )(x2, t2)

    # Tiny finalize in plain JAX: collapse cores / sublanes / lanes, then
    # difference the cumulative threshold sums into per-bin count / loss-sum.
    cum_cnt = jnp.sum(cnt.reshape(n_outer, bins + 1, SUBLANES, LANES), axis=(0, 2, 3))
    cum_lsum = jnp.sum(lsum.reshape(n_outer, bins + 1, SUBLANES, LANES), axis=(0, 2, 3))
    bin_count = cum_cnt[:bins] - cum_cnt[1:]
    bin_loss = cum_lsum[:bins] - cum_lsum[1:]

    new_bin_count = bin_count
    if last_bin_count is not None:
        bin_count = alpha * last_bin_count + (1.0 - alpha) * bin_count
        new_bin_count = bin_count

    nonempty = jnp.sum(bin_count > 0).astype(jnp.float32)
    gd = jnp.maximum(bin_count * nonempty, 1e-6)
    beta = N / gd
    # sum_i beta[bin_i] * l_i / numel  ==  sum_k beta_k * bin_loss_k / numel
    loss = jnp.sum(beta * bin_loss) / n
    return loss, new_bin_count


def _reference(x, target, bins=10, alpha=0.5, last_bin_count=None):
    """Pure-JAX translation of GHM_Loss.forward (GHM-C, stable-sigmoid form)."""
    e = jnp.exp(-jnp.abs(x))
    sig = jnp.where(x >= 0.0, 1.0 / (1.0 + e), e / (1.0 + e))
    g = jnp.abs(sig - target)
    bin_idx = jnp.floor(g * (bins - 0.0001)).astype(jnp.int32)
    bin_count = jnp.stack(
        [jnp.sum(bin_idx == i).astype(jnp.float32) for i in range(bins)])
    N = x.shape[0]
    new_state = bin_count
    if last_bin_count is not None:
        bin_count = alpha * last_bin_count + (1.0 - alpha) * bin_count
        new_state = bin_count
    nonempty = jnp.sum(bin_count > 0).astype(jnp.float32)
    gd = jnp.maximum(bin_count * nonempty, 1e-6)
    beta = N / gd
    w = beta[bin_idx]
    l = jnp.maximum(x, 0.0) - x * target + jnp.log1p(e)
    return jnp.mean(w * l), new_state


if __name__ == "__main__":
    key = jax.random.PRNGKey(0)
    k1, k2 = jax.random.split(key)

    # GHM-C style inputs: logits and targets of the same shape.
    B, C, H, W = 2, 4, 16, 16
    x = jax.random.normal(k1, (B, C, H, W), dtype=jnp.float32)
    target = jax.random.bernoulli(k2, 0.5, (B, C, H, W)).astype(jnp.float32)

    loss, state = ghm_c_loss(x, target, bins=10, alpha=0.5)
    loss = jax.block_until_ready(loss)

    ref_loss, ref_state = _reference(x, target, bins=10, alpha=0.5)

    # Counts are exact integers; a 1-ulp sigmoid difference could in principle
    # flip an element lying exactly on a bin edge, so allow +-1 per bin and
    # only demand the tight loss tolerance when the histograms match exactly.
    assert jnp.max(jnp.abs(state - ref_state)) <= 1.0, (state, ref_state)
    counts_exact = bool(jnp.all(state == ref_state))
    rtol = 1e-4 if counts_exact else 1e-2
    assert jnp.allclose(loss, ref_loss, rtol=rtol, atol=1e-7), (loss, ref_loss)

    # Second call exercises the EMA path of the module's _last_bin_count buffer.
    loss2, _ = ghm_c_loss(x, target, bins=10, alpha=0.5, last_bin_count=state)
    loss2 = jax.block_until_ready(loss2)
    ref_loss2, _ = _reference(x, target, bins=10, alpha=0.5,
                              last_bin_count=ref_state)
    assert jnp.allclose(loss2, ref_loss2, rtol=rtol, atol=1e-7), (loss2, ref_loss2)

    print("KERNEL_OK")
</pallas_src>

<mosaic_0001>
module attributes {stable_mosaic.version = 11 : i64} {
  func.func @_ghm_hist_kernel(%arg0: i32, %arg1: i32, %arg2: memref<32x128xf32, #tpu.memory_space<vmem>>, %arg3: memref<32x128xf32, #tpu.memory_space<vmem>>, %arg4: memref<1x88x128xf32, #tpu.memory_space<vmem>>, %arg5: memref<1x88x128xf32, #tpu.memory_space<vmem>>) attributes {dimension_semantics = [#tpu.dimension_semantics<parallel>, #tpu.dimension_semantics<arbitrary>], iteration_bounds = array<i64: 1, 1>, scalar_prefetch = 0 : i64, scratch_operands = 0 : i64, tpu.core_type = #tpu.core_type<tc>, window_params = [{transform_indices = @transform_0, window_bounds = array<i64: 32, 128>}, {transform_indices = @transform_1, window_bounds = array<i64: 32, 128>}, {transform_indices = @transform_2, window_bounds = array<i64: 1, 88, 128>}, {transform_indices = @transform_3, window_bounds = array<i64: 1, 88, 128>}]} {
    %c0_i32 = arith.constant 0 : i32
    %0 = arith.cmpi eq, %arg1, %c0_i32 : i32
    %1 = arith.extui %0 : i1 to i32
    %c0_i32_0 = arith.constant 0 : i32
    %2 = arith.cmpi ne, %1, %c0_i32_0 : i32
    scf.if %2 {
      %cst_179 = arith.constant 0.000000e+00 : f32
      %265 = vector.broadcast %cst_179 : f32 to vector<88x128xf32>
      %c0_180 = arith.constant 0 : index
      %c0_181 = arith.constant 0 : index
      %c0_182 = arith.constant 0 : index
      %266 = vector.load %arg4[%c0_180, %c0_181, %c0_182] : memref<1x88x128xf32, #tpu.memory_space<vmem>>, vector<1x88x128xf32>
      %267 = vector.shape_cast %266 : vector<1x88x128xf32> to vector<88x128xf32>
      %268 = vector.shape_cast %265 : vector<88x128xf32> to vector<1x88x128xf32>
      tpu.vector_store %arg4[%c0_180, %c0_181, %c0_182], %268 {strides = array<i32>} : memref<1x88x128xf32, #tpu.memory_space<vmem>>, vector<1x88x128xf32>,
      %cst_183 = arith.constant 0.000000e+00 : f32
      %269 = vector.broadcast %cst_183 : f32 to vector<88x128xf32>
      %c0_184 = arith.constant 0 : index
      %c0_185 = arith.constant 0 : index
      %c0_186 = arith.constant 0 : index
      %270 = vector.load %arg5[%c0_184, %c0_185, %c0_186] : memref<1x88x128xf32, #tpu.memory_space<vmem>>, vector<1x88x128xf32>
      %271 = vector.shape_cast %270 : vector<1x88x128xf32> to vector<88x128xf32>
      %272 = vector.shape_cast %269 : vector<88x128xf32> to vector<1x88x128xf32>
      tpu.vector_store %arg5[%c0_184, %c0_185, %c0_186], %272 {strides = array<i32>} : memref<1x88x128xf32, #tpu.memory_space<vmem>>, vector<1x88x128xf32>,
    } else {
    }
    %c1_i32 = arith.constant 1 : i32
    %3 = arith.muli %arg0, %c1_i32 : i32
    %4 = arith.addi %3, %arg1 : i32
    %c32_i32 = arith.constant 32 : i32
    %5 = arith.muli %4, %c32_i32 : i32
    %c32_i32_1 = arith.constant 32 : i32
    %6 = arith.subi %c32_i32_1, %5 : i32
    %c0_i32_2 = arith.constant 0 : i32
    %c32_i32_3 = arith.constant 32 : i32
    %7 = arith.maxsi %c0_i32_2, %6 : i32
    %8 = arith.minsi %c32_i32_3, %7 : i32
    %9 = tpu.iota {dimensions = array<i32: 0>} : vector<32x128xi32>
    %cst = arith.constant 9.99989986 : f32
    %c0_i32_4 = arith.constant 0 : i32
    %c32_i32_5 = arith.constant 32 : i32
    %10 = arith.muli %c0_i32_4, %c32_i32_5 : i32
    %11 = tpu.assume_multiple %10, 32 : i32
    %12 = arith.index_cast %11 : i32 to index
    %c0 = arith.constant 0 : index
    %13 = vector.load %arg2[%12, %c0] : memref<32x128xf32, #tpu.memory_space<vmem>>, vector<32x128xf32>
    %14 = tpu.assume_multiple %10, 32 : i32
    %15 = arith.index_cast %14 : i32 to index
    %c0_6 = arith.constant 0 : index
    %16 = vector.load %arg3[%15, %c0_6] : memref<32x128xf32, #tpu.memory_space<vmem>>, vector<32x128xf32>
    %17 = math.absf %13 : vector<32x128xf32>
    %cst_7 = arith.constant 0.000000e+00 : f32
    %18 = vector.broadcast %cst_7 : f32 to vector<32x128xf32>
    %19 = arith.subf %18, %17 : vector<32x128xf32>
    %20 = math.exp %19 : vector<32x128xf32>
    %cst_8 = arith.constant 1.000000e+00 : f32
    %21 = vector.broadcast %cst_8 : f32 to vector<32x128xf32>
    %22 = arith.addf %21, %20 : vector<32x128xf32>
    %23 = tpu.reciprocal %22 : vector<32x128xf32> -> vector<32x128xf32>
    %cst_9 = arith.constant 0.000000e+00 : f32
    %24 = vector.broadcast %cst_9 : f32 to vector<32x128xf32>
    %25 = arith.cmpf oge, %13, %24 : vector<32x128xf32>
    %26 = arith.mulf %20, %23 : vector<32x128xf32>
    %27 = arith.select %25, %23, %26 : vector<32x128xi1>, vector<32x128xf32>
    %cst_10 = arith.constant 0.000000e+00 : f32
    %28 = vector.broadcast %cst_10 : f32 to vector<32x128xf32>
    %29 = arith.maximumf %13, %28 : vector<32x128xf32>
    %30 = arith.mulf %13, %16 : vector<32x128xf32>
    %31 = arith.subf %29, %30 : vector<32x128xf32>
    %32 = math.log1p %20 : vector<32x128xf32>
    %33 = arith.addf %31, %32 : vector<32x128xf32>
    %34 = arith.subf %27, %16 : vector<32x128xf32>
    %35 = math.absf %34 : vector<32x128xf32>
    %36 = vector.broadcast %cst : f32 to vector<32x128xf32>
    %37 = arith.mulf %35, %36 : vector<32x128xf32>
    %38 = arith.subi %8, %10 : i32
    %39 = vector.broadcast %38 : i32 to vector<32x128xi32>
    %40 = arith.cmpi slt, %9, %39 : vector<32x128xi32>
    %cst_11 = arith.constant -1.000000e+00 : f32
    %41 = vector.broadcast %cst_11 : f32 to vector<32x128xf32>
    %42 = arith.select %40, %37, %41 : vector<32x128xi1>, vector<32x128xf32>
    %43 = vector.shape_cast %42 : vector<32x128xf32> to vector<4x8x128xf32>
    %44 = vector.shape_cast %33 : vector<32x128xf32> to vector<4x8x128xf32>
    %cst_12 = arith.constant 0.000000e+00 : f32
    %45 = vector.broadcast %cst_12 : f32 to vector<4x8x128xf32>
    %46 = arith.cmpf oge, %43, %45 : vector<4x8x128xf32>
    %c0_13 = arith.constant 0 : index
    %c0_14 = arith.constant 0 : index
    %c0_15 = arith.constant 0 : index
    %47 = vector.load %arg4[%c0_13, %c0_14, %c0_15] : memref<1x88x128xf32, #tpu.memory_space<vmem>>, vector<1x8x128xf32>
    %48 = vector.shape_cast %47 : vector<1x8x128xf32> to vector<8x128xf32>
    %49 = arith.extui %46 : vector<4x8x128xi1> to vector<4x8x128xi32>
    %50 = arith.sitofp %49 : vector<4x8x128xi32> to vector<4x8x128xf32>
    %cst_16 = arith.constant dense<0.000000e+00> : vector<8x128xf32>
    %51 = vector.multi_reduction <add>, %50, %cst_16 [0] : vector<4x8x128xf32> to vector<8x128xf32>
    %52 = arith.addf %48, %51 : vector<8x128xf32>
    %c0_17 = arith.constant 0 : index
    %c0_18 = arith.constant 0 : index
    %c0_19 = arith.constant 0 : index
    %53 = vector.load %arg4[%c0_17, %c0_18, %c0_19] : memref<1x88x128xf32, #tpu.memory_space<vmem>>, vector<1x8x128xf32>
    %54 = vector.shape_cast %53 : vector<1x8x128xf32> to vector<8x128xf32>
    %55 = vector.shape_cast %52 : vector<8x128xf32> to vector<1x8x128xf32>
    tpu.vector_store %arg4[%c0_17, %c0_18, %c0_19], %55 {strides = array<i32>} : memref<1x88x128xf32, #tpu.memory_space<vmem>>, vector<1x8x128xf32>,
    %c0_20 = arith.constant 0 : index
    %c0_21 = arith.constant 0 : index
    %c0_22 = arith.constant 0 : index
    %56 = vector.load %arg5[%c0_20, %c0_21, %c0_22] : memref<1x88x128xf32, #tpu.memory_space<vmem>>, vector<1x8x128xf32>
    %57 = vector.shape_cast %56 : vector<1x8x128xf32> to vector<8x128xf32>
    %cst_23 = arith.constant 0.000000e+00 : f32
    %58 = vector.broadcast %cst_23 : f32 to vector<4x8x128xf32>
    %59 = arith.select %46, %44, %58 : vector<4x8x128xi1>, vector<4x8x128xf32>
    %cst_24 = arith.constant dense<0.000000e+00> : vector<8x128xf32>
    %60 = vector.multi_reduction <add>, %59, %cst_24 [0] : vector<4x8x128xf32> to vector<8x128xf32>
    %61 = arith.addf %57, %60 : vector<8x128xf32>
    %c0_25 = arith.constant 0 : index
    %c0_26 = arith.constant 0 : index
    %c0_27 = arith.constant 0 : index
    %62 = vector.load %arg5[%c0_25, %c0_26, %c0_27] : memref<1x88x128xf32, #tpu.memory_space<vmem>>, vector<1x8x128xf32>
    %63 = vector.shape_cast %62 : vector<1x8x128xf32> to vector<8x128xf32>
    %64 = vector.shape_cast %61 : vector<8x128xf32> to vector<1x8x128xf32>
    tpu.vector_store %arg5[%c0_25, %c0_26, %c0_27], %64 {strides = array<i32>} : memref<1x88x128xf32, #tpu.memory_space<vmem>>, vector<1x8x128xf32>,
    %cst_28 = arith.constant 1.000000e+00 : f32
    %65 = vector.broadcast %cst_28 : f32 to vector<4x8x128xf32>
    %66 = arith.cmpf oge, %43, %65 : vector<4x8x128xf32>
    %c0_29 = arith.constant 0 : index
    %c8 = arith.constant 8 : index
    %c0_30 = arith.constant 0 : index
    %67 = vector.load %arg4[%c0_29, %c8, %c0_30] : memref<1x88x128xf32, #tpu.memory_space<vmem>>, vector<1x8x128xf32>
    %68 = vector.shape_cast %67 : vector<1x8x128xf32> to vector<8x128xf32>
    %69 = arith.extui %66 : vector<4x8x128xi1> to vector<4x8x128xi32>
    %70 = arith.sitofp %69 : vector<4x8x128xi32> to vector<4x8x128xf32>
    %cst_31 = arith.constant dense<0.000000e+00> : vector<8x128xf32>
    %71 = vector.multi_reduction <add>, %70, %cst_31 [0] : vector<4x8x128xf32> to vector<8x128xf32>
    %72 = arith.addf %68, %71 : vector<8x128xf32>
    %c0_32 = arith.constant 0 : index
    %c8_33 = arith.constant 8 : index
    %c0_34 = arith.constant 0 : index
    %73 = vector.load %arg4[%c0_32, %c8_33, %c0_34] : memref<1x88x128xf32, #tpu.memory_space<vmem>>, vector<1x8x128xf32>
    %74 = vector.shape_cast %73 : vector<1x8x128xf32> to vector<8x128xf32>
    %75 = vector.shape_cast %72 : vector<8x128xf32> to vector<1x8x128xf32>
    tpu.vector_store %arg4[%c0_32, %c8_33, %c0_34], %75 {strides = array<i32>} : memref<1x88x128xf32, #tpu.memory_space<vmem>>, vector<1x8x128xf32>,
    %c0_35 = arith.constant 0 : index
    %c8_36 = arith.constant 8 : index
    %c0_37 = arith.constant 0 : index
    %76 = vector.load %arg5[%c0_35, %c8_36, %c0_37] : memref<1x88x128xf32, #tpu.memory_space<vmem>>, vector<1x8x128xf32>
    %77 = vector.shape_cast %76 : vector<1x8x128xf32> to vector<8x128xf32>
    %cst_38 = arith.constant 0.000000e+00 : f32
    %78 = vector.broadcast %cst_38 : f32 to vector<4x8x128xf32>
    %79 = arith.select %66, %44, %78 : vector<4x8x128xi1>, vector<4x8x128xf32>
    %cst_39 = arith.constant dense<0.000000e+00> : vector<8x128xf32>
    %80 = vector.multi_reduction <add>, %79, %cst_39 [0] : vector<4x8x128xf32> to vector<8x128xf32>
    %81 = arith.addf %77, %80 : vector<8x128xf32>
    %c0_40 = arith.constant 0 : index
    %c8_41 = arith.constant 8 : index
    %c0_42 = arith.constant 0 : index
    %82 = vector.load %arg5[%c0_40, %c8_41, %c0_42] : memref<1x88x128xf32, #tpu.memory_space<vmem>>, vector<1x8x128xf32>
    %83 = vector.shape_cast %82 : vector<1x8x128xf32> to vector<8x128xf32>
    %84 = vector.shape_cast %81 : vector<8x128xf32> to vector<1x8x128xf32>
    tpu.vector_store %arg5[%c0_40, %c8_41, %c0_42], %84 {strides = array<i32>} : memref<1x88x128xf32, #tpu.memory_space<vmem>>, vector<1x8x128xf32>,
    %cst_43 = arith.constant 2.000000e+00 : f32
    %85 = vector.broadcast %cst_43 : f32 to vector<4x8x128xf32>
    %86 = arith.cmpf oge, %43, %85 : vector<4x8x128xf32>
    %c0_44 = arith.constant 0 : index
    %c16 = arith.constant 16 : index
    %c0_45 = arith.constant 0 : index
    %87 = vector.load %arg4[%c0_44, %c16, %c0_45] : memref<1x88x128xf32, #tpu.memory_space<vmem>>, vector<1x8x128xf32>
    %88 = vector.shape_cast %87 : vector<1x8x128xf32> to vector<8x128xf32>
    %89 = arith.extui %86 : vector<4x8x128xi1> to vector<4x8x128xi32>
    %90 = arith.sitofp %89 : vector<4x8x128xi32> to vector<4x8x128xf32>
    %cst_46 = arith.constant dense<0.000000e+00> : vector<8x128xf32>
    %91 = vector.multi_reduction <add>, %90, %cst_46 [0] : vector<4x8x128xf32> to vector<8x128xf32>
    %92 = arith.addf %88, %91 : vector<8x128xf32>
    %c0_47 = arith.constant 0 : index
    %c16_48 = arith.constant 16 : index
    %c0_49 = arith.constant 0 : index
    %93 = vector.load %arg4[%c0_47, %c16_48, %c0_49] : memref<1x88x128xf32, #tpu.memory_space<vmem>>, vector<1x8x128xf32>
    %94 = vector.shape_cast %93 : vector<1x8x128xf32> to vector<8x128xf32>
    %95 = vector.shape_cast %92 : vector<8x128xf32> to vector<1x8x128xf32>
    tpu.vector_store %arg4[%c0_47, %c16_48, %c0_49], %95 {strides = array<i32>} : memref<1x88x128xf32, #tpu.memory_space<vmem>>, vector<1x8x128xf32>,
    %c0_50 = arith.constant 0 : index
    %c16_51 = arith.constant 16 : index
    %c0_52 = arith.constant 0 : index
    %96 = vector.load %arg5[%c0_50, %c16_51, %c0_52] : memref<1x88x128xf32, #tpu.memory_space<vmem>>, vector<1x8x128xf32>
    %97 = vector.shape_cast %96 : vector<1x8x128xf32> to vector<8x128xf32>
    %cst_53 = arith.constant 0.000000e+00 : f32
    %98 = vector.broadcast %cst_53 : f32 to vector<4x8x128xf32>
    %99 = arith.select %86, %44, %98 : vector<4x8x128xi1>, vector<4x8x128xf32>
    %cst_54 = arith.constant dense<0.000000e+00> : vector<8x128xf32>
    %100 = vector.multi_reduction <add>, %99, %cst_54 [0] : vector<4x8x128xf32> to vector<8x128xf32>
    %101 = arith.addf %97, %100 : vector<8x128xf32>
    %c0_55 = arith.constant 0 : index
    %c16_56 = arith.constant 16 : index
    %c0_57 = arith.constant 0 : index
    %102 = vector.load %arg5[%c0_55, %c16_56, %c0_57] : memref<1x88x128xf32, #tpu.memory_space<vmem>>, vector<1x8x128xf32>
    %103 = vector.shape_cast %102 : vector<1x8x128xf32> to vector<8x128xf32>
    %104 = vector.shape_cast %101 : vector<8x128xf32> to vector<1x8x128xf32>
    tpu.vector_store %arg5[%c0_55, %c16_56, %c0_57], %104 {strides = array<i32>} : memref<1x88x128xf32, #tpu.memory_space<vmem>>, vector<1x8x128xf32>,
    %cst_58 = arith.constant 3.000000e+00 : f32
    %105 = vector.broadcast %cst_58 : f32 to vector<4x8x128xf32>
    %106 = arith.cmpf oge, %43, %105 : vector<4x8x128xf32>
    %c0_59 = arith.constant 0 : index
    %c24 = arith.constant 24 : index
    %c0_60 = arith.constant 0 : index
    %107 = vector.load %arg4[%c0_59, %c24, %c0_60] : memref<1x88x128xf32, #tpu.memory_space<vmem>>, vector<1x8x128xf32>
    %108 = vector.shape_cast %107 : vector<1x8x128xf32> to vector<8x128xf32>
    %109 = arith.extui %106 : vector<4x8x128xi1> to vector<4x8x128xi32>
    %110 = arith.sitofp %109 : vector<4x8x128xi32> to vector<4x8x128xf32>
    %cst_61 = arith.constant dense<0.000000e+00> : vector<8x128xf32>
    %111 = vector.multi_reduction <add>, %110, %cst_61 [0] : vector<4x8x128xf32> to vector<8x128xf32>
    %112 = arith.addf %108, %111 : vector<8x128xf32>
    %c0_62 = arith.constant 0 : index
    %c24_63 = arith.constant 24 : index
    %c0_64 = arith.constant 0 : index
    %113 = vector.load %arg4[%c0_62, %c24_63, %c0_64] : memref<1x88x128xf32, #tpu.memory_space<vmem>>, vector<1x8x128xf32>
    %114 = vector.shape_cast %113 : vector<1x8x128xf32> to vector<8x128xf32>
    %115 = vector.shape_cast %112 : vector<8x128xf32> to vector<1x8x128xf32>
    tpu.vector_store %arg4[%c0_62, %c24_63, %c0_64], %115 {strides = array<i32>} : memref<1x88x128xf32, #tpu.memory_space<vmem>>, vector<1x8x128xf32>,
    %c0_65 = arith.constant 0 : index
    %c24_66 = arith.constant 24 : index
    %c0_67 = arith.constant 0 : index
    %116 = vector.load %arg5[%c0_65, %c24_66, %c0_67] : memref<1x88x128xf32, #tpu.memory_space<vmem>>, vector<1x8x128xf32>
    %117 = vector.shape_cast %116 : vector<1x8x128xf32> to vector<8x128xf32>
    %cst_68 = arith.constant 0.000000e+00 : f32
    %118 = vector.broadcast %cst_68 : f32 to vector<4x8x128xf32>
    %119 = arith.select %106, %44, %118 : vector<4x8x128xi1>, vector<4x8x128xf32>
    %cst_69 = arith.constant dense<0.000000e+00> : vector<8x128xf32>
    %120 = vector.multi_reduction <add>, %119, %cst_69 [0] : vector<4x8x128xf32> to vector<8x128xf32>
    %121 = arith.addf %117, %120 : vector<8x128xf32>
    %c0_70 = arith.constant 0 : index
    %c24_71 = arith.constant 24 : index
    %c0_72 = arith.constant 0 : index
    %122 = vector.load %arg5[%c0_70, %c24_71, %c0_72] : memref<1x88x128xf32, #tpu.memory_space<vmem>>, vector<1x8x128xf32>
    %123 = vector.shape_cast %122 : vector<1x8x128xf32> to vector<8x128xf32>
    %124 = vector.shape_cast %121 : vector<8x128xf32> to vector<1x8x128xf32>
    tpu.vector_store %arg5[%c0_70, %c24_71, %c0_72], %124 {strides = array<i32>} : memref<1x88x128xf32, #tpu.memory_space<vmem>>, vector<1x8x128xf32>,
    %cst_73 = arith.constant 4.000000e+00 : f32
    %125 = vector.broadcast %cst_73 : f32 to vector<4x8x128xf32>
    %126 = arith.cmpf oge, %43, %125 : vector<4x8x128xf32>
    %c0_74 = arith.constant 0 : index
    %c32 = arith.constant 32 : index
    %c0_75 = arith.constant 0 : index
    %127 = vector.load %arg4[%c0_74, %c32, %c0_75] : memref<1x88x128xf32, #tpu.memory_space<vmem>>, vector<1x8x128xf32>
    %128 = vector.shape_cast %127 : vector<1x8x128xf32> to vector<8x128xf32>
    %129 = arith.extui %126 : vector<4x8x128xi1> to vector<4x8x128xi32>
    %130 = arith.sitofp %129 : vector<4x8x128xi32> to vector<4x8x128xf32>
    %cst_76 = arith.constant dense<0.000000e+00> : vector<8x128xf32>
    %131 = vector.multi_reduction <add>, %130, %cst_76 [0] : vector<4x8x128xf32> to vector<8x128xf32>
    %132 = arith.addf %128, %131 : vector<8x128xf32>
    %c0_77 = arith.constant 0 : index
    %c32_78 = arith.constant 32 : index
    %c0_79 = arith.constant 0 : index
    %133 = vector.load %arg4[%c0_77, %c32_78, %c0_79] : memref<1x88x128xf32, #tpu.memory_space<vmem>>, vector<1x8x128xf32>
    %134 = vector.shape_cast %133 : vector<1x8x128xf32> to vector<8x128xf32>
    %135 = vector.shape_cast %132 : vector<8x128xf32> to vector<1x8x128xf32>
    tpu.vector_store %arg4[%c0_77, %c32_78, %c0_79], %135 {strides = array<i32>} : memref<1x88x128xf32, #tpu.memory_space<vmem>>, vector<1x8x128xf32>,
    %c0_80 = arith.constant 0 : index
    %c32_81 = arith.constant 32 : index
    %c0_82 = arith.constant 0 : index
    %136 = vector.load %arg5[%c0_80, %c32_81, %c0_82] : memref<1x88x128xf32, #tpu.memory_space<vmem>>, vector<1x8x128xf32>
    %137 = vector.shape_cast %136 : vector<1x8x128xf32> to vector<8x128xf32>
    %cst_83 = arith.constant 0.000000e+00 : f32
    %138 = vector.broadcast %cst_83 : f32 to vector<4x8x128xf32>
    %139 = arith.select %126, %44, %138 : vector<4x8x128xi1>, vector<4x8x128xf32>
    %cst_84 = arith.constant dense<0.000000e+00> : vector<8x128xf32>
    %140 = vector.multi_reduction <add>, %139, %cst_84 [0] : vector<4x8x128xf32> to vector<8x128xf32>
    %141 = arith.addf %137, %140 : vector<8x128xf32>
    %c0_85 = arith.constant 0 : index
    %c32_86 = arith.constant 32 : index
    %c0_87 = arith.constant 0 : index
    %142 = vector.load %arg5[%c0_85, %c32_86, %c0_87] : memref<1x88x128xf32, #tpu.memory_space<vmem>>, vector<1x8x128xf32>
    %143 = vector.shape_cast %142 : vector<1x8x128xf32> to vector<8x128xf32>
    %144 = vector.shape_cast %141 : vector<8x128xf32> to vector<1x8x128xf32>
    tpu.vector_store %arg5[%c0_85, %c32_86, %c0_87], %144 {strides = array<i32>} : memref<1x88x128xf32, #tpu.memory_space<vmem>>, vector<1x8x128xf32>,
    %cst_88 = arith.constant 5.000000e+00 : f32
    %145 = vector.broadcast %cst_88 : f32 to vector<4x8x128xf32>
    %146 = arith.cmpf oge, %43, %145 : vector<4x8x128xf32>
    %c0_89 = arith.constant 0 : index
    %c40 = arith.constant 40 : index
    %c0_90 = arith.constant 0 : index
    %147 = vector.load %arg4[%c0_89, %c40, %c0_90] : memref<1x88x128xf32, #tpu.memory_space<vmem>>, vector<1x8x128xf32>
    %148 = vector.shape_cast %147 : vector<1x8x128xf32> to vector<8x128xf32>
    %149 = arith.extui %146 : vector<4x8x128xi1> to vector<4x8x128xi32>
    %150 = arith.sitofp %149 : vector<4x8x128xi32> to vector<4x8x128xf32>
    %cst_91 = arith.constant dense<0.000000e+00> : vector<8x128xf32>
    %151 = vector.multi_reduction <add>, %150, %cst_91 [0] : vector<4x8x128xf32> to vector<8x128xf32>
    %152 = arith.addf %148, %151 : vector<8x128xf32>
    %c0_92 = arith.constant 0 : index
    %c40_93 = arith.constant 40 : index
    %c0_94 = arith.constant 0 : index
    %153 = vector.load %arg4[%c0_92, %c40_93, %c0_94] : memref<1x88x128xf32, #tpu.memory_space<vmem>>, vector<1x8x128xf32>
    %154 = vector.shape_cast %153 : vector<1x8x128xf32> to vector<8x128xf32>
    %155 = vector.shape_cast %152 : vector<8x128xf32> to vector<1x8x128xf32>
    tpu.vector_store %arg4[%c0_92, %c40_93, %c0_94], %155 {strides = array<i32>} : memref<1x88x128xf32, #tpu.memory_space<vmem>>, vector<1x8x128xf32>,
    %c0_95 = arith.constant 0 : index
    %c40_96 = arith.constant 40 : index
    %c0_97 = arith.constant 0 : index
    %156 = vector.load %arg5[%c0_95, %c40_96, %c0_97] : memref<1x88x128xf32, #tpu.memory_space<vmem>>, vector<1x8x128xf32>
    %157 = vector.shape_cast %156 : vector<1x8x128xf32> to vector<8x128xf32>
    %cst_98 = arith.constant 0.000000e+00 : f32
    %158 = vector.broadcast %cst_98 : f32 to vector<4x8x128xf32>
    %159 = arith.select %146, %44, %158 : vector<4x8x128xi1>, vector<4x8x128xf32>
    %cst_99 = arith.constant dense<0.000000e+00> : vector<8x128xf32>
    %160 = vector.multi_reduction <add>, %159, %cst_99 [0] : vector<4x8x128xf32> to vector<8x128xf32>
    %161 = arith.addf %157, %160 : vector<8x128xf32>
    %c0_100 = arith.constant 0 : index
    %c40_101 = arith.constant 40 : index
    %c0_102 = arith.constant 0 : index
    %162 = vector.load %arg5[%c0_100, %c40_101, %c0_102] : memref<1x88x128xf32, #tpu.memory_space<vmem>>, vector<1x8x128xf32>
    %163 = vector.shape_cast %162 : vector<1x8x128xf32> to vector<8x128xf32>
    %164 = vector.shape_cast %161 : vector<8x128xf32> to vector<1x8x128xf32>
    tpu.vector_store %arg5[%c0_100, %c40_101, %c0_102], %164 {strides = array<i32>} : memref<1x88x128xf32, #tpu.memory_space<vmem>>, vector<1x8x128xf32>,
    %cst_103 = arith.constant 6.000000e+00 : f32
    %165 = vector.broadcast %cst_103 : f32 to vector<4x8x128xf32>
    %166 = arith.cmpf oge, %43, %165 : vector<4x8x128xf32>
    %c0_104 = arith.constant 0 : index
    %c48 = arith.constant 48 : index
    %c0_105 = arith.constant 0 : index
    %167 = vector.load %arg4[%c0_104, %c48, %c0_105] : memref<1x88x128xf32, #tpu.memory_space<vmem>>, vector<1x8x128xf32>
    %168 = vector.shape_cast %167 : vector<1x8x128xf32> to vector<8x128xf32>
    %169 = arith.extui %166 : vector<4x8x128xi1> to vector<4x8x128xi32>
    %170 = arith.sitofp %169 : vector<4x8x128xi32> to vector<4x8x128xf32>
    %cst_106 = arith.constant dense<0.000000e+00> : vector<8x128xf32>
    %171 = vector.multi_reduction <add>, %170, %cst_106 [0] : vector<4x8x128xf32> to vector<8x128xf32>
    %172 = arith.addf %168, %171 : vector<8x128xf32>
    %c0_107 = arith.constant 0 : index
    %c48_108 = arith.constant 48 : index
    %c0_109 = arith.constant 0 : index
    %173 = vector.load %arg4[%c0_107, %c48_108, %c0_109] : memref<1x88x128xf32, #tpu.memory_space<vmem>>, vector<1x8x128xf32>
    %174 = vector.shape_cast %173 : vector<1x8x128xf32> to vector<8x128xf32>
    %175 = vector.shape_cast %172 : vector<8x128xf32> to vector<1x8x128xf32>
    tpu.vector_store %arg4[%c0_107, %c48_108, %c0_109], %175 {strides = array<i32>} : memref<1x88x128xf32, #tpu.memory_space<vmem>>, vector<1x8x128xf32>,
    %c0_110 = arith.constant 0 : index
    %c48_111 = arith.constant 48 : index
    %c0_112 = arith.constant 0 : index
    %176 = vector.load %arg5[%c0_110, %c48_111, %c0_112] : memref<1x88x128xf32, #tpu.memory_space<vmem>>, vector<1x8x128xf32>
    %177 = vector.shape_cast %176 : vector<1x8x128xf32> to vector<8x128xf32>
    %cst_113 = arith.constant 0.000000e+00 : f32
    %178 = vector.broadcast %cst_113 : f32 to vector<4x8x128xf32>
    %179 = arith.select %166, %44, %178 : vector<4x8x128xi1>, vector<4x8x128xf32>
    %cst_114 = arith.constant dense<0.000000e+00> : vector<8x128xf32>
    %180 = vector.multi_reduction <add>, %179, %cst_114 [0] : vector<4x8x128xf32> to vector<8x128xf32>
    %181 = arith.addf %177, %180 : vector<8x128xf32>
    %c0_115 = arith.constant 0 : index
    %c48_116 = arith.constant 48 : index
    %c0_117 = arith.constant 0 : index
    %182 = vector.load %arg5[%c0_115, %c48_116, %c0_117] : memref<1x88x128xf32, #tpu.memory_space<vmem>>, vector<1x8x128xf32>
    %183 = vector.shape_cast %182 : vector<1x8x128xf32> to vector<8x128xf32>
    %184 = vector.shape_cast %181 : vector<8x128xf32> to vector<1x8x128xf32>
    tpu.vector_store %arg5[%c0_115, %c48_116, %c0_117], %184 {strides = array<i32>} : memref<1x88x128xf32, #tpu.memory_space<vmem>>, vector<1x8x128xf32>,
    %cst_118 = arith.constant 7.000000e+00 : f32
    %185 = vector.broadcast %cst_118 : f32 to vector<4x8x128xf32>
    %186 = arith.cmpf oge, %43, %185 : vector<4x8x128xf32>
    %c0_119 = arith.constant 0 : index
    %c56 = arith.constant 56 : index
    %c0_120 = arith.constant 0 : index
    %187 = vector.load %arg4[%c0_119, %c56, %c0_120] : memref<1x88x128xf32, #tpu.memory_space<vmem>>, vector<1x8x128xf32>
    %188 = vector.shape_cast %187 : vector<1x8x128xf32> to vector<8x128xf32>
    %189 = arith.extui %186 : vector<4x8x128xi1> to vector<4x8x128xi32>
    %190 = arith.sitofp %189 : vector<4x8x128xi32> to vector<4x8x128xf32>
    %cst_121 = arith.constant dense<0.000000e+00> : vector<8x128xf32>
    %191 = vector.multi_reduction <add>, %190, %cst_121 [0] : vector<4x8x128xf32> to vector<8x128xf32>
    %192 = arith.addf %188, %191 : vector<8x128xf32>
    %c0_122 = arith.constant 0 : index
    %c56_123 = arith.constant 56 : index
    %c0_124 = arith.constant 0 : index
    %193 = vector.load %arg4[%c0_122, %c56_123, %c0_124] : memref<1x88x128xf32, #tpu.memory_space<vmem>>, vector<1x8x128xf32>
    %194 = vector.shape_cast %193 : vector<1x8x128xf32> to vector<8x128xf32>
    %195 = vector.shape_cast %192 : vector<8x128xf32> to vector<1x8x128xf32>
    tpu.vector_store %arg4[%c0_122, %c56_123, %c0_124], %195 {strides = array<i32>} : memref<1x88x128xf32, #tpu.memory_space<vmem>>, vector<1x8x128xf32>,
    %c0_125 = arith.constant 0 : index
    %c56_126 = arith.constant 56 : index
    %c0_127 = arith.constant 0 : index
    %196 = vector.load %arg5[%c0_125, %c56_126, %c0_127] : memref<1x88x128xf32, #tpu.memory_space<vmem>>, vector<1x8x128xf32>
    %197 = vector.shape_cast %196 : vector<1x8x128xf32> to vector<8x128xf32>
    %cst_128 = arith.constant 0.000000e+00 : f32
    %198 = vector.broadcast %cst_128 : f32 to vector<4x8x128xf32>
    %199 = arith.select %186, %44, %198 : vector<4x8x128xi1>, vector<4x8x128xf32>
    %cst_129 = arith.constant dense<0.000000e+00> : vector<8x128xf32>
    %200 = vector.multi_reduction <add>, %199, %cst_129 [0] : vector<4x8x128xf32> to vector<8x128xf32>
    %201 = arith.addf %197, %200 : vector<8x128xf32>
    %c0_130 = arith.constant 0 : index
    %c56_131 = arith.constant 56 : index
    %c0_132 = arith.constant 0 : index
    %202 = vector.load %arg5[%c0_130, %c56_131, %c0_132] : memref<1x88x128xf32, #tpu.memory_space<vmem>>, vector<1x8x128xf32>
    %203 = vector.shape_cast %202 : vector<1x8x128xf32> to vector<8x128xf32>
    %204 = vector.shape_cast %201 : vector<8x128xf32> to vector<1x8x128xf32>
    tpu.vector_store %arg5[%c0_130, %c56_131, %c0_132], %204 {strides = array<i32>} : memref<1x88x128xf32, #tpu.memory_space<vmem>>, vector<1x8x128xf32>,
    %cst_133 = arith.constant 8.000000e+00 : f32
    %205 = vector.broadcast %cst_133 : f32 to vector<4x8x128xf32>
    %206 = arith.cmpf oge, %43, %205 : vector<4x8x128xf32>
    %c0_134 = arith.constant 0 : index
    %c64 = arith.constant 64 : index
    %c0_135 = arith.constant 0 : index
    %207 = vector.load %arg4[%c0_134, %c64, %c0_135] : memref<1x88x128xf32, #tpu.memory_space<vmem>>, vector<1x8x128xf32>
    %208 = vector.shape_cast %207 : vector<1x8x128xf32> to vector<8x128xf32>
    %209 = arith.extui %206 : vector<4x8x128xi1> to vector<4x8x128xi32>
    %210 = arith.sitofp %209 : vector<4x8x128xi32> to vector<4x8x128xf32>
    %cst_136 = arith.constant dense<0.000000e+00> : vector<8x128xf32>
    %211 = vector.multi_reduction <add>, %210, %cst_136 [0] : vector<4x8x128xf32> to vector<8x128xf32>
    %212 = arith.addf %208, %211 : vector<8x128xf32>
    %c0_137 = arith.constant 0 : index
    %c64_138 = arith.constant 64 : index
    %c0_139 = arith.constant 0 : index
    %213 = vector.load %arg4[%c0_137, %c64_138, %c0_139] : memref<1x88x128xf32, #tpu.memory_space<vmem>>, vector<1x8x128xf32>
    %214 = vector.shape_cast %213 : vector<1x8x128xf32> to vector<8x128xf32>
    %215 = vector.shape_cast %212 : vector<8x128xf32> to vector<1x8x128xf32>
    tpu.vector_store %arg4[%c0_137, %c64_138, %c0_139], %215 {strides = array<i32>} : memref<1x88x128xf32, #tpu.memory_space<vmem>>, vector<1x8x128xf32>,
    %c0_140 = arith.constant 0 : index
    %c64_141 = arith.constant 64 : index
    %c0_142 = arith.constant 0 : index
    %216 = vector.load %arg5[%c0_140, %c64_141, %c0_142] : memref<1x88x128xf32, #tpu.memory_space<vmem>>, vector<1x8x128xf32>
    %217 = vector.shape_cast %216 : vector<1x8x128xf32> to vector<8x128xf32>
    %cst_143 = arith.constant 0.000000e+00 : f32
    %218 = vector.broadcast %cst_143 : f32 to vector<4x8x128xf32>
    %219 = arith.select %206, %44, %218 : vector<4x8x128xi1>, vector<4x8x128xf32>
    %cst_144 = arith.constant dense<0.000000e+00> : vector<8x128xf32>
    %220 = vector.multi_reduction <add>, %219, %cst_144 [0] : vector<4x8x128xf32> to vector<8x128xf32>
    %221 = arith.addf %217, %220 : vector<8x128xf32>
    %c0_145 = arith.constant 0 : index
    %c64_146 = arith.constant 64 : index
    %c0_147 = arith.constant 0 : index
    %222 = vector.load %arg5[%c0_145, %c64_146, %c0_147] : memref<1x88x128xf32, #tpu.memory_space<vmem>>, vector<1x8x128xf32>
    %223 = vector.shape_cast %222 : vector<1x8x128xf32> to vector<8x128xf32>
    %224 = vector.shape_cast %221 : vector<8x128xf32> to vector<1x8x128xf32>
    tpu.vector_store %arg5[%c0_145, %c64_146, %c0_147], %224 {strides = array<i32>} : memref<1x88x128xf32, #tpu.memory_space<vmem>>, vector<1x8x128xf32>,
    %cst_148 = arith.constant 9.000000e+00 : f32
    %225 = vector.broadcast %cst_148 : f32 to vector<4x8x128xf32>
    %226 = arith.cmpf oge, %43, %225 : vector<4x8x128xf32>
    %c0_149 = arith.constant 0 : index
    %c72 = arith.constant 72 : index
    %c0_150 = arith.constant 0 : index
    %227 = vector.load %arg4[%c0_149, %c72, %c0_150] : memref<1x88x128xf32, #tpu.memory_space<vmem>>, vector<1x8x128xf32>
    %228 = vector.shape_cast %227 : vector<1x8x128xf32> to vector<8x128xf32>
    %229 = arith.extui %226 : vector<4x8x128xi1> to vector<4x8x128xi32>
    %230 = arith.sitofp %229 : vector<4x8x128xi32> to vector<4x8x128xf32>
    %cst_151 = arith.constant dense<0.000000e+00> : vector<8x128xf32>
    %231 = vector.multi_reduction <add>, %230, %cst_151 [0] : vector<4x8x128xf32> to vector<8x128xf32>
    %232 = arith.addf %228, %231 : vector<8x128xf32>
    %c0_152 = arith.constant 0 : index
    %c72_153 = arith.constant 72 : index
    %c0_154 = arith.constant 0 : index
    %233 = vector.load %arg4[%c0_152, %c72_153, %c0_154] : memref<1x88x128xf32, #tpu.memory_space<vmem>>, vector<1x8x128xf32>
    %234 = vector.shape_cast %233 : vector<1x8x128xf32> to vector<8x128xf32>
    %235 = vector.shape_cast %232 : vector<8x128xf32> to vector<1x8x128xf32>
    tpu.vector_store %arg4[%c0_152, %c72_153, %c0_154], %235 {strides = array<i32>} : memref<1x88x128xf32, #tpu.memory_space<vmem>>, vector<1x8x128xf32>,
    %c0_155 = arith.constant 0 : index
    %c72_156 = arith.constant 72 : index
    %c0_157 = arith.constant 0 : index
    %236 = vector.load %arg5[%c0_155, %c72_156, %c0_157] : memref<1x88x128xf32, #tpu.memory_space<vmem>>, vector<1x8x128xf32>
    %237 = vector.shape_cast %236 : vector<1x8x128xf32> to vector<8x128xf32>
    %cst_158 = arith.constant 0.000000e+00 : f32
    %238 = vector.broadcast %cst_158 : f32 to vector<4x8x128xf32>
    %239 = arith.select %226, %44, %238 : vector<4x8x128xi1>, vector<4x8x128xf32>
    %cst_159 = arith.constant dense<0.000000e+00> : vector<8x128xf32>
    %240 = vector.multi_reduction <add>, %239, %cst_159 [0] : vector<4x8x128xf32> to vector<8x128xf32>
    %241 = arith.addf %237, %240 : vector<8x128xf32>
    %c0_160 = arith.constant 0 : index
    %c72_161 = arith.constant 72 : index
    %c0_162 = arith.constant 0 : index
    %242 = vector.load %arg5[%c0_160, %c72_161, %c0_162] : memref<1x88x128xf32, #tpu.memory_space<vmem>>, vector<1x8x128xf32>
    %243 = vector.shape_cast %242 : vector<1x8x128xf32> to vector<8x128xf32>
    %244 = vector.shape_cast %241 : vector<8x128xf32> to vector<1x8x128xf32>
    tpu.vector_store %arg5[%c0_160, %c72_161, %c0_162], %244 {strides = array<i32>} : memref<1x88x128xf32, #tpu.memory_space<vmem>>, vector<1x8x128xf32>,
    %cst_163 = arith.constant 1.000000e+01 : f32
    %245 = vector.broadcast %cst_163 : f32 to vector<4x8x128xf32>
    %246 = arith.cmpf oge, %43, %245 : vector<4x8x128xf32>
    %c0_164 = arith.constant 0 : index
    %c80 = arith.constant 80 : index
    %c0_165 = arith.constant 0 : index
    %247 = vector.load %arg4[%c0_164, %c80, %c0_165] : memref<1x88x128xf32, #tpu.memory_space<vmem>>, vector<1x8x128xf32>
    %248 = vector.shape_cast %247 : vector<1x8x128xf32> to vector<8x128xf32>
    %249 = arith.extui %246 : vector<4x8x128xi1> to vector<4x8x128xi32>
    %250 = arith.sitofp %249 : vector<4x8x128xi32> to vector<4x8x128xf32>
    %cst_166 = arith.constant dense<0.000000e+00> : vector<8x128xf32>
    %251 = vector.multi_reduction <add>, %250, %cst_166 [0] : vector<4x8x128xf32> to vector<8x128xf32>
    %252 = arith.addf %248, %251 : vector<8x128xf32>
    %c0_167 = arith.constant 0 : index
    %c80_168 = arith.constant 80 : index
    %c0_169 = arith.constant 0 : index
    %253 = vector.load %arg4[%c0_167, %c80_168, %c0_169] : memref<1x88x128xf32, #tpu.memory_space<vmem>>, vector<1x8x128xf32>
    %254 = vector.shape_cast %253 : vector<1x8x128xf32> to vector<8x128xf32>
    %255 = vector.shape_cast %252 : vector<8x128xf32> to vector<1x8x128xf32>
    tpu.vector_store %arg4[%c0_167, %c80_168, %c0_169], %255 {strides = array<i32>} : memref<1x88x128xf32, #tpu.memory_space<vmem>>, vector<1x8x128xf32>,
    %c0_170 = arith.constant 0 : index
    %c80_171 = arith.constant 80 : index
    %c0_172 = arith.constant 0 : index
    %256 = vector.load %arg5[%c0_170, %c80_171, %c0_172] : memref<1x88x128xf32, #tpu.memory_space<vmem>>, vector<1x8x128xf32>
    %257 = vector.shape_cast %256 : vector<1x8x128xf32> to vector<8x128xf32>
    %cst_173 = arith.constant 0.000000e+00 : f32
    %258 = vector.broadcast %cst_173 : f32 to vector<4x8x128xf32>
    %259 = arith.select %246, %44, %258 : vector<4x8x128xi1>, vector<4x8x128xf32>
    %cst_174 = arith.constant dense<0.000000e+00> : vector<8x128xf32>
    %260 = vector.multi_reduction <add>, %259, %cst_174 [0] : vector<4x8x128xf32> to vector<8x128xf32>
    %261 = arith.addf %257, %260 : vector<8x128xf32>
    %c0_175 = arith.constant 0 : index
    %c80_176 = arith.constant 80 : index
    %c0_177 = arith.constant 0 : index
    %262 = vector.load %arg5[%c0_175, %c80_176, %c0_177] : memref<1x88x128xf32, #tpu.memory_space<vmem>>, vector<1x8x128xf32>
    %263 = vector.shape_cast %262 : vector<1x8x128xf32> to vector<8x128xf32>
    %264 = vector.shape_cast %261 : vector<8x128xf32> to vector<1x8x128xf32>
    tpu.vector_store %arg5[%c0_175, %c80_176, %c0_177], %264 {strides = array<i32>} : memref<1x88x128xf32, #tpu.memory_space<vmem>>, vector<1x8x128xf32>,
    %c1_i32_178 = arith.constant 1 : i32
    return
  }
  func.func @transform_0(%arg0: i32, %arg1: i32) -> (i32, i32) {
    %c1_i32 = arith.constant 1 : i32
    %0 = arith.muli %arg0, %c1_i32 : i32
    %1 = arith.addi %0, %arg1 : i32
    %c0_i32 = arith.constant 0 : i32
    %2 = arith.minsi %1, %c0_i32 : i32
    %c0_i32_0 = arith.constant 0 : i32
    %c0_i32_1 = arith.constant 0 : i32
    return %2, %c0_i32_0 : i32, i32
  }
  func.func @transform_1(%arg0: i32, %arg1: i32) -> (i32, i32) {
    %c1_i32 = arith.constant 1 : i32
    %0 = arith.muli %arg0, %c1_i32 : i32
    %1 = arith.addi %0, %arg1 : i32
    %c0_i32 = arith.constant 0 : i32
    %2 = arith.minsi %1, %c0_i32 : i32
    %c0_i32_0 = arith.constant 0 : i32
    %c0_i32_1 = arith.constant 0 : i32
    return %2, %c0_i32_0 : i32, i32
  }
  func.func @transform_2(%arg0: i32, %arg1: i32) -> (i32, i32, i32) {
    %c0_i32 = arith.constant 0 : i32
    %c0_i32_0 = arith.constant 0 : i32
    %c0_i32_1 = arith.constant 0 : i32
    return %arg0, %c0_i32, %c0_i32_0 : i32, i32, i32
  }
  func.func @transform_3(%arg0: i32, %arg1: i32) -> (i32, i32, i32) {
    %c0_i32 = arith.constant 0 : i32
    %c0_i32_0 = arith.constant 0 : i32
    %c0_i32_1 = arith.constant 0 : i32
    return %arg0, %c0_i32, %c0_i32_0 : i32, i32, i32
  }
}

</mosaic_0001>

<llo_original>
// kernel: tpu_custom_call.1
$region0: #{tpu_custom_call.1}
  #allocation0 [shape = 'u32[]', space=smem, size = 0x4, offset = 0x4, fixed_abs, tag = 'smem constant byte address 0x4 - core index']
  #allocation1 [shape = 'u32[72,128]{1,0:T(1,128)}', space=vmem, size = 0x9000, scoped, tag = 'internal scratch']
  %s0 = inlined_call_operand.hbm [shape: f32[32,128], index: 0, kind: input, shape index: {}]
  %s1 = inlined_call_operand.hbm [shape: f32[32,128], index: 1, kind: input, shape index: {}]
  %s2 = inlined_call_operand.hbm [shape: f32[1,88,128], index: 2, kind: output, shape index: {0}]
  %s3 = inlined_call_operand.hbm [shape: f32[1,88,128], index: 3, kind: output, shape index: {1}]
  %4 = xla_tuple %s2, %s3
  %s5 = sld [smem:[#allocation0]]
  $region38: #{tpu_custom_call.1} parent=0
    _
  %s7 = ssub.s32 1, %s5
  %s8 = scalar_select 0, %s7, %s5
  $region1: #{tpu_custom_call.1} parent=0
    #allocation2 [shape = 'u8[16384]{0}', space=vmem, size = 0x4000, scoped, tag = 'input window, operand 0, single buffered']
    #allocation3 [shape = 's32[1]{0}', space=sflag, size = 0x4, scoped, tag = 'scoped memory for tpu_custom_call.1']
    #allocation4 [shape = 's32[1]{0}', space=sflag, size = 0x4, scoped, tag = 'scoped memory for tpu_custom_call.1']
    #allocation5 [shape = 'u8[16384]{0}', space=vmem, size = 0x4000, scoped, tag = 'input window, operand 1, single buffered']
    #allocation6 [shape = 's32[1]{0}', space=sflag, size = 0x4, scoped, tag = 'scoped memory for tpu_custom_call.1']
    #allocation7 [shape = 'u8[45056]{0}', space=vmem, size = 0xb000, scoped, tag = 'output window, operand 0, single buffered']
    #allocation8 [shape = 'u8[45056]{0}', space=vmem, size = 0xb000, scoped, tag = 'output window, operand 1, single buffered']
    #allocation9 [shape = 's32[1]{0}', space=sflag, size = 0x4, scoped, tag = 'scoped memory for tpu_custom_call.1']
    %9 = vsyncpa [#allocation3], 0
    %10 = vsyncpa [#allocation6], 0
    %11 = vsyncpa [#allocation4], 0
    %12 = vsyncpa [#allocation9], 0
    // Predicated region
    $region2: #{tpu_custom_call.1} parent=1 // pred_check
      _
    $region3: #{tpu_custom_call.1} parent=1 // pred_check_branch
      %14 = sbr.rel (0) target = $region5
    $region4: #{tpu_custom_call.1} parent=1 // pred_region
      %s15 = sadd.s32 0, 0
      %p16 = scmp.lt.s32.totalorder %s15, 0
      %s17 = scalar_select %p16, %s15, 0
      %s18 = smul.u32 4, %s17
      %20 = vsyncadd [#allocation3], 0
      %s21 = smul.addr %s18, 8
      %s22 = scalar_lea.hbm %s0, %s21
      %s23 = sshll.u32 %s22, 4
      %s24 = int_to_ptr.hbm [resolvable:$true] %s23
      %s25 = sshll.u32 [#allocation2], 4
      %s26 = int_to_ptr.vmem [resolvable:$true] %s25
      %31 = dma.hbm_to_vmem [thread:$0]  %s24, 512, %s26, [#allocation3], 128, 128, 8
    $region5: #{tpu_custom_call.1} parent=1 // pred_fallthru
      _
    // Predicated region
    $region6: #{tpu_custom_call.1} parent=1 // pred_check
      _
    $region7: #{tpu_custom_call.1} parent=1 // pred_check_branch
      %33 = sbr.rel (0) target = $region9
    $region8: #{tpu_custom_call.1} parent=1 // pred_region
      %s34 = sadd.s32 0, 0
      %p35 = scmp.lt.s32.totalorder %s34, 0
      %s36 = scalar_select %p35, %s34, 0
      %s37 = smul.u32 4, %s36
      %39 = vsyncadd [#allocation6], 0
      %s40 = smul.addr %s37, 8
      %s41 = scalar_lea.hbm %s1, %s40
      %s42 = sshll.u32 %s41, 4
      %s43 = int_to_ptr.hbm [resolvable:$true] %s42
      %s44 = sshll.u32 [#allocation5], 4
      %s45 = int_to_ptr.vmem [resolvable:$true] %s44
      %50 = dma.hbm_to_vmem [thread:$0]  %s43, 512, %s45, [#allocation6], 128, 128, 8
    $region9: #{tpu_custom_call.1} parent=1 // pred_fallthru
      _
    // Predicated region
    $region10: #{tpu_custom_call.1} parent=1 // pred_check
      _
    $region11: #{tpu_custom_call.1} parent=1 // pred_check_branch
      %52 = sbr.rel (0) target = $region13
    $region12: #{tpu_custom_call.1} parent=1 // pred_region
      %54 = dma.done [#allocation3], 512
    $region13: #{tpu_custom_call.1} parent=1 // pred_fallthru
      _
    // Predicated region
    $region14: #{tpu_custom_call.1} parent=1 // pred_check
      _
    $region15: #{tpu_custom_call.1} parent=1 // pred_check_branch
      %56 = sbr.rel (0) target = $region17
    $region16: #{tpu_custom_call.1} parent=1 // pred_region
      %58 = dma.done [#allocation6], 512
    $region17: #{tpu_custom_call.1} parent=1 // pred_fallthru
      _
    %s59 = sadd.s32 0, 0
    %p60 = scmp.lt.s32.totalorder %s59, 0
    %s61 = scalar_select %p60, %s59, 0
    %s62 = smul.u32 4, %s61
    %s63 = sadd.s32 0, 0
    %p64 = scmp.lt.s32.totalorder %s63, 0
    %s65 = scalar_select %p64, %s63, 0
    %s66 = smul.u32 4, %s65
    %p67 = scmp.eq.s32.totalorder 0, 0
    // Predicated region
    $region18: #{tpu_custom_call.1} parent=1 // pred_check
      %p68 = pneg %p67
    $region19: #{tpu_custom_call.1} parent=1 // pred_check_branch
      %70 = sbr.rel (%p68) target = $region21
    $region20: #{tpu_custom_call.1} parent=1 // pred_region
      %71 = vst [vmem:[#allocation7] sm:$0xff] 0.0
      %72 = vst [vmem:[#allocation7 + $0x8] sm:$0xff] 0.0
      %73 = vst [vmem:[#allocation7 + $0x10] sm:$0xff] 0.0
      %74 = vst [vmem:[#allocation7 + $0x18] sm:$0xff] 0.0
      %75 = vst [vmem:[#allocation7 + $0x20] sm:$0xff] 0.0
      %76 = vst [vmem:[#allocation7 + $0x28] sm:$0xff] 0.0
      %77 = vst [vmem:[#allocation7 + $0x30] sm:$0xff] 0.0
      %78 = vst [vmem:[#allocation7 + $0x38] sm:$0xff] 0.0
      %79 = vst [vmem:[#allocation7 + $0x40] sm:$0xff] 0.0
      %80 = vst [vmem:[#allocation7 + $0x48] sm:$0xff] 0.0
      %81 = vst [vmem:[#allocation7 + $0x50] sm:$0xff] 0.0
      %82 = vst [vmem:[#allocation8] sm:$0xff] 0.0
      %83 = vst [vmem:[#allocation8 + $0x8] sm:$0xff] 0.0
      %84 = vst [vmem:[#allocation8 + $0x10] sm:$0xff] 0.0
      %85 = vst [vmem:[#allocation8 + $0x18] sm:$0xff] 0.0
      %86 = vst [vmem:[#allocation8 + $0x20] sm:$0xff] 0.0
      %87 = vst [vmem:[#allocation8 + $0x28] sm:$0xff] 0.0
      %88 = vst [vmem:[#allocation8 + $0x30] sm:$0xff] 0.0
      %89 = vst [vmem:[#allocation8 + $0x38] sm:$0xff] 0.0
      %90 = vst [vmem:[#allocation8 + $0x40] sm:$0xff] 0.0
      %91 = vst [vmem:[#allocation8 + $0x48] sm:$0xff] 0.0
      %92 = vst [vmem:[#allocation8 + $0x50] sm:$0xff] 0.0
    $region21: #{tpu_custom_call.1} parent=1 // pred_fallthru
      _
    %s93 = sadd.s32 0, 0
    %s94 = smul.u32 %s93, 32
    %s95 = ssub.s32 32, %s94
    %p96 = scmp.gt.s32.totalorder %s95, 0
    %s97 = scalar_select %p96, %s95, 0
    %p98 = scmp.lt.s32.totalorder %s97, 32
    %s99 = scalar_select %p98, %s97, 32
    %v100 = vlaneseq
    %v101 = vshrl.u32 %v100, 7
    %v102 = vadd.s32 %v101, 8
    %v103 = vadd.s32 %v101, 16
    %v104 = vadd.s32 %v101, 24
    %v105 = vld [vmem:[#allocation2] sm:$0xff]
    %v106 = vld [vmem:[#allocation2 + $0x8] sm:$0xff]
    %v107 = vld [vmem:[#allocation2 + $0x10] sm:$0xff]
    %v108 = vld [vmem:[#allocation2 + $0x18] sm:$0xff]
    %v109 = vld [vmem:[#allocation5] sm:$0xff]
    %v110 = vld [vmem:[#allocation5 + $0x8] sm:$0xff]
    %v111 = vld [vmem:[#allocation5 + $0x10] sm:$0xff]
    %v112 = vld [vmem:[#allocation5 + $0x18] sm:$0xff]
    %v113 = vand.u32 2147483647, %v105
    %v114 = vand.u32 2147483647, %v106
    %v115 = vand.u32 2147483647, %v107
    %v116 = vand.u32 2147483647, %v108
    %v117 = vsub.f32 0.0, %v113
    %v118 = vsub.f32 0.0, %v114
    %v119 = vsub.f32 0.0, %v115
    %v120 = vsub.f32 0.0, %v116
    %v121 = vmul.f32 %v117, 1.442695
    %v122 = vpow.pop %v121
    %v123 = vmul.f32 %v118, 1.442695
    %v124 = vpow.pop %v123
    %v125 = vmul.f32 %v119, 1.442695
    %v126 = vpow.pop %v125
    %v127 = vmul.f32 %v120, 1.442695
    %v128 = vpow.pop %v127
    %v129 = vadd.f32 %v122, 1.0
    %v130 = vadd.f32 %v124, 1.0
    %v131 = vadd.f32 %v126, 1.0
    %v132 = vadd.f32 %v128, 1.0
    %v133 = vrcp.pop %v129
    %v134 = vmul.f32 %v129, %v133
    %v135 = vsub.f32 1.0, %v134
    %v136 = vmul.f32 %v133, %v135
    %v137 = vadd.f32 %v133, %v136
    %vm138 = vweird.f32 %v129
    %vm139 = vweird.f32 %v133
    %vm140 = vmor %vm138, %vm139
    %v141 = vsel %vm140, %v133, %v137
    %v142 = vand.u32 2147483647, %v129
    %vm143 = vcmp.eq.f32.partialorder %v142, 8.507059e+37
    %v144 = vand.u32 %v129, 2147483648
    %v145 = vor.u32 1.1754944e-38, %v144
    %v146 = vsel %vm143, %v145, %v141
    %v147 = vrcp.pop %v130
    %v148 = vmul.f32 %v130, %v147
    %v149 = vsub.f32 1.0, %v148
    %v150 = vmul.f32 %v147, %v149
    %v151 = vadd.f32 %v147, %v150
    %vm152 = vweird.f32 %v130
    %vm153 = vweird.f32 %v147
    %vm154 = vmor %vm152, %vm153
    %v155 = vsel %vm154, %v147, %v151
    %v156 = vand.u32 2147483647, %v130
    %vm157 = vcmp.eq.f32.partialorder %v156, 8.507059e+37
    %v158 = vand.u32 %v130, 2147483648
    %v159 = vor.u32 1.1754944e-38, %v158
    %v160 = vsel %vm157, %v159, %v155
    %v161 = vrcp.pop %v131
    %v162 = vmul.f32 %v131, %v161
    %v163 = vsub.f32 1.0, %v162
    %v164 = vmul.f32 %v161, %v163
    %v165 = vadd.f32 %v161, %v164
    %vm166 = vweird.f32 %v131
    %vm167 = vweird.f32 %v161
    %vm168 = vmor %vm166, %vm167
    %v169 = vsel %vm168, %v161, %v165
    %v170 = vand.u32 2147483647, %v131
    %vm171 = vcmp.eq.f32.partialorder %v170, 8.507059e+37
    %v172 = vand.u32 %v131, 2147483648
    %v173 = vor.u32 1.1754944e-38, %v172
    %v174 = vsel %vm171, %v173, %v169
    %v175 = vrcp.pop %v132
    %v176 = vmul.f32 %v132, %v175
    %v177 = vsub.f32 1.0, %v176
    %v178 = vmul.f32 %v175, %v177
    %v179 = vadd.f32 %v175, %v178
    %vm180 = vweird.f32 %v132
    %vm181 = vweird.f32 %v175
    %vm182 = vmor %vm180, %vm181
    %v183 = vsel %vm182, %v175, %v179
    %v184 = vand.u32 2147483647, %v132
    %vm185 = vcmp.eq.f32.partialorder %v184, 8.507059e+37
    %v186 = vand.u32 %v132, 2147483648
    %v187 = vor.u32 1.1754944e-38, %v186
    %v188 = vsel %vm185, %v187, %v183
    %vm189 = vcmp.ge.f32.partialorder %v105, 0.0
    %vm190 = vcmp.ge.f32.partialorder %v106, 0.0
    %vm191 = vcmp.ge.f32.partialorder %v107, 0.0
    %vm192 = vcmp.ge.f32.partialorder %v108, 0.0
    %v193 = vmul.f32 %v122, %v146
    %v194 = vmul.f32 %v124, %v160
    %v195 = vmul.f32 %v126, %v174
    %v196 = vmul.f32 %v128, %v188
    %v197 = vsel %vm189, %v146, %v193
    %v198 = vsel %vm190, %v160, %v194
    %v199 = vsel %vm191, %v174, %v195
    %v200 = vsel %vm192, %v188, %v196
    %v201 = vmax.f32 %v105, 0.0
    %v202 = vmax.f32 %v106, 0.0
    %v203 = vmax.f32 %v107, 0.0
    %v204 = vmax.f32 %v108, 0.0
    %v205 = vmul.f32 %v105, %v109
    %v206 = vmul.f32 %v106, %v110
    %v207 = vmul.f32 %v107, %v111
    %v208 = vmul.f32 %v108, %v112
    %v209 = vsub.f32 %v201, %v205
    %v210 = vsub.f32 %v202, %v206
    %v211 = vsub.f32 %v203, %v207
    %v212 = vsub.f32 %v204, %v208
    %v213 = vadd.f32 %v122, 1.0
    %v214 = vlog2.pop %v213
    %v215 = vmul.f32 %v214, 0.6931472
    %v216 = vmul.f32 -0.5, %v122
    %v217 = vadd.f32 %v216, 1.0
    %v218 = vmul.f32 %v217, %v122
    %v219 = vand.u32 2147483647, %v122
    %vm220 = vcmp.lt.f32.partialorder %v219, 0.0004427343
    %v221 = vsel %vm220, %v218, %v215
    %v222 = vadd.f32 %v124, 1.0
    %v223 = vlog2.pop %v222
    %v224 = vmul.f32 %v223, 0.6931472
    %v225 = vmul.f32 -0.5, %v124
    %v226 = vadd.f32 %v225, 1.0
    %v227 = vmul.f32 %v226, %v124
    %v228 = vand.u32 2147483647, %v124
    %vm229 = vcmp.lt.f32.partialorder %v228, 0.0004427343
    %v230 = vsel %vm229, %v227, %v224
    %v231 = vadd.f32 %v126, 1.0
    %v232 = vlog2.pop %v231
    %v233 = vmul.f32 %v232, 0.6931472
    %v234 = vmul.f32 -0.5, %v126
    %v235 = vadd.f32 %v234, 1.0
    %v236 = vmul.f32 %v235, %v126
    %v237 = vand.u32 2147483647, %v126
    %vm238 = vcmp.lt.f32.partialorder %v237, 0.0004427343
    %v239 = vsel %vm238, %v236, %v233
    %v240 = vadd.f32 %v128, 1.0
    %v241 = vlog2.pop %v240
    %v242 = vmul.f32 %v241, 0.6931472
    %v243 = vmul.f32 -0.5, %v128
    %v244 = vadd.f32 %v243, 1.0
    %v245 = vmul.f32 %v244, %v128
    %v246 = vand.u32 2147483647, %v128
    %vm247 = vcmp.lt.f32.partialorder %v246, 0.0004427343
    %v248 = vsel %vm247, %v245, %v242
    %v249 = vadd.f32 %v209, %v221
    %v250 = vadd.f32 %v210, %v230
    %v251 = vadd.f32 %v211, %v239
    %v252 = vadd.f32 %v212, %v248
    %v253 = vsub.f32 %v197, %v109
    %v254 = vsub.f32 %v198, %v110
    %v255 = vsub.f32 %v199, %v111
    %v256 = vsub.f32 %v200, %v112
    %v257 = vand.u32 2147483647, %v253
    %v258 = vand.u32 2147483647, %v254
    %v259 = vand.u32 2147483647, %v255
    %v260 = vand.u32 2147483647, %v256
    %v261 = vmul.f32 %v257, 9.9999
    %v262 = vmul.f32 %v258, 9.9999
    %v263 = vmul.f32 %v259, 9.9999
    %v264 = vmul.f32 %v260, 9.9999
    %v265 = vstv %s99
    %vm266 = vcmp.lt.s32.totalorder %v101, %v265
    %vm267 = vcmp.lt.s32.totalorder %v102, %v265
    %vm268 = vcmp.lt.s32.totalorder %v103, %v265
    %vm269 = vcmp.lt.s32.totalorder %v104, %v265
    %v270 = vsel %vm266, %v261, -1.0
    %v271 = vsel %vm267, %v262, -1.0
    %v272 = vsel %vm268, %v263, -1.0
    %v273 = vsel %vm269, %v264, -1.0
    %vm274 = vcmp.ge.f32.partialorder %v270, 0.0
    %vm275 = vcmp.ge.f32.partialorder %v271, 0.0
    %vm276 = vcmp.ge.f32.partialorder %v272, 0.0
    %vm277 = vcmp.ge.f32.partialorder %v273, 0.0
    %v278 = vld [vmem:[#allocation7] sm:$0xff]
    %v279 = vsel %vm274, 1, 0
    %v280 = vsel %vm275, 1, 0
    %v281 = vsel %vm276, 1, 0
    %v282 = vsel %vm277, 1, 0
    %v283 = vcvt.s32.f32 %v279
    %v284 = vcvt.s32.f32 %v280
    %v285 = vcvt.s32.f32 %v281
    %v286 = vcvt.s32.f32 %v282
    %v287 = vadd.f32 %v283, %v284
    %v288 = vadd.f32 %v287, %v285
    %v289 = vadd.f32 %v288, %v286
    %v290 = vadd.f32 %v278, %v289
    %291 = vst [vmem:[#allocation7] sm:$0xff] %v290
    %v292 = vld [vmem:[#allocation8] sm:$0xff]
    %v293 = vsel %vm274, %v249, 0.0
    %v294 = vsel %vm275, %v250, 0.0
    %v295 = vsel %vm276, %v251, 0.0
    %v296 = vsel %vm277, %v252, 0.0
    %v297 = vadd.f32 %v293, %v294
    %v298 = vadd.f32 %v297, %v295
    %v299 = vadd.f32 %v298, %v296
    %v300 = vadd.f32 %v292, %v299
    %301 = vst [vmem:[#allocation8] sm:$0xff] %v300
    %vm302 = vcmp.ge.f32.partialorder %v270, 1.0
    %vm303 = vcmp.ge.f32.partialorder %v271, 1.0
    %vm304 = vcmp.ge.f32.partialorder %v272, 1.0
    %vm305 = vcmp.ge.f32.partialorder %v273, 1.0
    %v306 = vld [vmem:[#allocation7 + $0x8] sm:$0xff]
    %v307 = vsel %vm302, 1, 0
    %v308 = vsel %vm303, 1, 0
    %v309 = vsel %vm304, 1, 0
    %v310 = vsel %vm305, 1, 0
    %v311 = vcvt.s32.f32 %v307
    %v312 = vcvt.s32.f32 %v308
    %v313 = vcvt.s32.f32 %v309
    %v314 = vcvt.s32.f32 %v310
    %v315 = vadd.f32 %v311, %v312
    %v316 = vadd.f32 %v315, %v313
    %v317 = vadd.f32 %v316, %v314
    %v318 = vadd.f32 %v306, %v317
    %319 = vst [vmem:[#allocation7 + $0x8] sm:$0xff] %v318
    %v320 = vld [vmem:[#allocation8 + $0x8] sm:$0xff]
    %v321 = vsel %vm302, %v249, 0.0
    %v322 = vsel %vm303, %v250, 0.0
    %v323 = vsel %vm304, %v251, 0.0
    %v324 = vsel %vm305, %v252, 0.0
    %v325 = vadd.f32 %v321, %v322
    %v326 = vadd.f32 %v325, %v323
    %v327 = vadd.f32 %v326, %v324
    %v328 = vadd.f32 %v320, %v327
    %329 = vst [vmem:[#allocation8 + $0x8] sm:$0xff] %v328
    %vm330 = vcmp.ge.f32.partialorder %v270, 2.0
    %vm331 = vcmp.ge.f32.partialorder %v271, 2.0
    %vm332 = vcmp.ge.f32.partialorder %v272, 2.0
    %vm333 = vcmp.ge.f32.partialorder %v273, 2.0
    %v334 = vld [vmem:[#allocation7 + $0x10] sm:$0xff]
    %v335 = vsel %vm330, 1, 0
    %v336 = vsel %vm331, 1, 0
    %v337 = vsel %vm332, 1, 0
    %v338 = vsel %vm333, 1, 0
    %v339 = vcvt.s32.f32 %v335
    %v340 = vcvt.s32.f32 %v336
    %v341 = vcvt.s32.f32 %v337
    %v342 = vcvt.s32.f32 %v338
    %v343 = vadd.f32 %v339, %v340
    %v344 = vadd.f32 %v343, %v341
    %v345 = vadd.f32 %v344, %v342
    %v346 = vadd.f32 %v334, %v345
    %347 = vst [vmem:[#allocation7 + $0x10] sm:$0xff] %v346
    %v348 = vld [vmem:[#allocation8 + $0x10] sm:$0xff]
    %v349 = vsel %vm330, %v249, 0.0
    %v350 = vsel %vm331, %v250, 0.0
    %v351 = vsel %vm332, %v251, 0.0
    %v352 = vsel %vm333, %v252, 0.0
    %v353 = vadd.f32 %v349, %v350
    %v354 = vadd.f32 %v353, %v351
    %v355 = vadd.f32 %v354, %v352
    %v356 = vadd.f32 %v348, %v355
    %357 = vst [vmem:[#allocation8 + $0x10] sm:$0xff] %v356
    %vm358 = vcmp.ge.f32.partialorder %v270, 3.0
    %vm359 = vcmp.ge.f32.partialorder %v271, 3.0
    %vm360 = vcmp.ge.f32.partialorder %v272, 3.0
    %vm361 = vcmp.ge.f32.partialorder %v273, 3.0
    %v362 = vld [vmem:[#allocation7 + $0x18] sm:$0xff]
    %v363 = vsel %vm358, 1, 0
    %v364 = vsel %vm359, 1, 0
    %v365 = vsel %vm360, 1, 0
    %v366 = vsel %vm361, 1, 0
    %v367 = vcvt.s32.f32 %v363
    %v368 = vcvt.s32.f32 %v364
    %v369 = vcvt.s32.f32 %v365
    %v370 = vcvt.s32.f32 %v366
    %v371 = vadd.f32 %v367, %v368
    %v372 = vadd.f32 %v371, %v369
    %v373 = vadd.f32 %v372, %v370
    %v374 = vadd.f32 %v362, %v373
    %375 = vst [vmem:[#allocation7 + $0x18] sm:$0xff] %v374
    %v376 = vld [vmem:[#allocation8 + $0x18] sm:$0xff]
    %v377 = vsel %vm358, %v249, 0.0
    %v378 = vsel %vm359, %v250, 0.0
    %v379 = vsel %vm360, %v251, 0.0
    %v380 = vsel %vm361, %v252, 0.0
    %v381 = vadd.f32 %v377, %v378
    %v382 = vadd.f32 %v381, %v379
    %v383 = vadd.f32 %v382, %v380
    %v384 = vadd.f32 %v376, %v383
    %385 = vst [vmem:[#allocation8 + $0x18] sm:$0xff] %v384
    %vm386 = vcmp.ge.f32.partialorder %v270, 4.0
    %vm387 = vcmp.ge.f32.partialorder %v271, 4.0
    %vm388 = vcmp.ge.f32.partialorder %v272, 4.0
    %vm389 = vcmp.ge.f32.partialorder %v273, 4.0
    %v390 = vld [vmem:[#allocation7 + $0x20] sm:$0xff]
    %v391 = vsel %vm386, 1, 0
    %v392 = vsel %vm387, 1, 0
    %v393 = vsel %vm388, 1, 0
    %v394 = vsel %vm389, 1, 0
    %v395 = vcvt.s32.f32 %v391
    %v396 = vcvt.s32.f32 %v392
    %v397 = vcvt.s32.f32 %v393
    %v398 = vcvt.s32.f32 %v394
    %v399 = vadd.f32 %v395, %v396
    %v400 = vadd.f32 %v399, %v397
    %v401 = vadd.f32 %v400, %v398
    %v402 = vadd.f32 %v390, %v401
    %403 = vst [vmem:[#allocation7 + $0x20] sm:$0xff] %v402
    %v404 = vld [vmem:[#allocation8 + $0x20] sm:$0xff]
    %v405 = vsel %vm386, %v249, 0.0
    %v406 = vsel %vm387, %v250, 0.0
    %v407 = vsel %vm388, %v251, 0.0
    %v408 = vsel %vm389, %v252, 0.0
    %v409 = vadd.f32 %v405, %v406
    %v410 = vadd.f32 %v409, %v407
    %v411 = vadd.f32 %v410, %v408
    %v412 = vadd.f32 %v404, %v411
    %413 = vst [vmem:[#allocation8 + $0x20] sm:$0xff] %v412
    %vm414 = vcmp.ge.f32.partialorder %v270, 5.0
    %vm415 = vcmp.ge.f32.partialorder %v271, 5.0
    %vm416 = vcmp.ge.f32.partialorder %v272, 5.0
    %vm417 = vcmp.ge.f32.partialorder %v273, 5.0
    %v418 = vld [vmem:[#allocation7 + $0x28] sm:$0xff]
    %v419 = vsel %vm414, 1, 0
    %v420 = vsel %vm415, 1, 0
    %v421 = vsel %vm416, 1, 0
    %v422 = vsel %vm417, 1, 0
    %v423 = vcvt.s32.f32 %v419
    %v424 = vcvt.s32.f32 %v420
    %v425 = vcvt.s32.f32 %v421
    %v426 = vcvt.s32.f32 %v422
    %v427 = vadd.f32 %v423, %v424
    %v428 = vadd.f32 %v427, %v425
    %v429 = vadd.f32 %v428, %v426
    %v430 = vadd.f32 %v418, %v429
    %431 = vst [vmem:[#allocation7 + $0x28] sm:$0xff] %v430
    %v432 = vld [vmem:[#allocation8 + $0x28] sm:$0xff]
    %v433 = vsel %vm414, %v249, 0.0
    %v434 = vsel %vm415, %v250, 0.0
    %v435 = vsel %vm416, %v251, 0.0
    %v436 = vsel %vm417, %v252, 0.0
    %v437 = vadd.f32 %v433, %v434
    %v438 = vadd.f32 %v437, %v435
    %v439 = vadd.f32 %v438, %v436
    %v440 = vadd.f32 %v432, %v439
    %441 = vst [vmem:[#allocation8 + $0x28] sm:$0xff] %v440
    %vm442 = vcmp.ge.f32.partialorder %v270, 6.0
    %vm443 = vcmp.ge.f32.partialorder %v271, 6.0
    %vm444 = vcmp.ge.f32.partialorder %v272, 6.0
    %vm445 = vcmp.ge.f32.partialorder %v273, 6.0
    %v446 = vld [vmem:[#allocation7 + $0x30] sm:$0xff]
    %v447 = vsel %vm442, 1, 0
    %v448 = vsel %vm443, 1, 0
    %v449 = vsel %vm444, 1, 0
    %v450 = vsel %vm445, 1, 0
    %v451 = vcvt.s32.f32 %v447
    %v452 = vcvt.s32.f32 %v448
    %v453 = vcvt.s32.f32 %v449
    %v454 = vcvt.s32.f32 %v450
    %v455 = vadd.f32 %v451, %v452
    %v456 = vadd.f32 %v455, %v453
    %v457 = vadd.f32 %v456, %v454
    %v458 = vadd.f32 %v446, %v457
    %459 = vst [vmem:[#allocation7 + $0x30] sm:$0xff] %v458
    %v460 = vld [vmem:[#allocation8 + $0x30] sm:$0xff]
    %v461 = vsel %vm442, %v249, 0.0
    %v462 = vsel %vm443, %v250, 0.0
    %v463 = vsel %vm444, %v251, 0.0
    %v464 = vsel %vm445, %v252, 0.0
    %v465 = vadd.f32 %v461, %v462
    %v466 = vadd.f32 %v465, %v463
    %v467 = vadd.f32 %v466, %v464
    %v468 = vadd.f32 %v460, %v467
    %469 = vst [vmem:[#allocation8 + $0x30] sm:$0xff] %v468
    %vm470 = vcmp.ge.f32.partialorder %v270, 7.0
    %vm471 = vcmp.ge.f32.partialorder %v271, 7.0
    %vm472 = vcmp.ge.f32.partialorder %v272, 7.0
    %vm473 = vcmp.ge.f32.partialorder %v273, 7.0
    %v474 = vld [vmem:[#allocation7 + $0x38] sm:$0xff]
    %v475 = vsel %vm470, 1, 0
    %v476 = vsel %vm471, 1, 0
    %v477 = vsel %vm472, 1, 0
    %v478 = vsel %vm473, 1, 0
    %v479 = vcvt.s32.f32 %v475
    %v480 = vcvt.s32.f32 %v476
    %v481 = vcvt.s32.f32 %v477
    %v482 = vcvt.s32.f32 %v478
    %v483 = vadd.f32 %v479, %v480
    %v484 = vadd.f32 %v483, %v481
    %v485 = vadd.f32 %v484, %v482
    %v486 = vadd.f32 %v474, %v485
    %487 = vst [vmem:[#allocation7 + $0x38] sm:$0xff] %v486
    %v488 = vld [vmem:[#allocation8 + $0x38] sm:$0xff]
    %v489 = vsel %vm470, %v249, 0.0
    %v490 = vsel %vm471, %v250, 0.0
    %v491 = vsel %vm472, %v251, 0.0
    %v492 = vsel %vm473, %v252, 0.0
    %v493 = vadd.f32 %v489, %v490
    %v494 = vadd.f32 %v493, %v491
    %v495 = vadd.f32 %v494, %v492
    %v496 = vadd.f32 %v488, %v495
    %497 = vst [vmem:[#allocation8 + $0x38] sm:$0xff] %v496
    %vm498 = vcmp.ge.f32.partialorder %v270, 8.0
    %vm499 = vcmp.ge.f32.partialorder %v271, 8.0
    %vm500 = vcmp.ge.f32.partialorder %v272, 8.0
    %vm501 = vcmp.ge.f32.partialorder %v273, 8.0
    %v502 = vld [vmem:[#allocation7 + $0x40] sm:$0xff]
    %v503 = vsel %vm498, 1, 0
    %v504 = vsel %vm499, 1, 0
    %v505 = vsel %vm500, 1, 0
    %v506 = vsel %vm501, 1, 0
    %v507 = vcvt.s32.f32 %v503
    %v508 = vcvt.s32.f32 %v504
    %v509 = vcvt.s32.f32 %v505
    %v510 = vcvt.s32.f32 %v506
    %v511 = vadd.f32 %v507, %v508
    %v512 = vadd.f32 %v511, %v509
    %v513 = vadd.f32 %v512, %v510
    %v514 = vadd.f32 %v502, %v513
    %515 = vst [vmem:[#allocation7 + $0x40] sm:$0xff] %v514
    %v516 = vld [vmem:[#allocation8 + $0x40] sm:$0xff]
    %v517 = vsel %vm498, %v249, 0.0
    %v518 = vsel %vm499, %v250, 0.0
    %v519 = vsel %vm500, %v251, 0.0
    %v520 = vsel %vm501, %v252, 0.0
    %v521 = vadd.f32 %v517, %v518
    %v522 = vadd.f32 %v521, %v519
    %v523 = vadd.f32 %v522, %v520
    %v524 = vadd.f32 %v516, %v523
    %525 = vst [vmem:[#allocation8 + $0x40] sm:$0xff] %v524
    %vm526 = vcmp.ge.f32.partialorder %v270, 9.0
    %vm527 = vcmp.ge.f32.partialorder %v271, 9.0
    %vm528 = vcmp.ge.f32.partialorder %v272, 9.0
    %vm529 = vcmp.ge.f32.partialorder %v273, 9.0
    %v530 = vld [vmem:[#allocation7 + $0x48] sm:$0xff]
    %v531 = vsel %vm526, 1, 0
    %v532 = vsel %vm527, 1, 0
    %v533 = vsel %vm528, 1, 0
    %v534 = vsel %vm529, 1, 0
    %v535 = vcvt.s32.f32 %v531
    %v536 = vcvt.s32.f32 %v532
    %v537 = vcvt.s32.f32 %v533
    %v538 = vcvt.s32.f32 %v534
    %v539 = vadd.f32 %v535, %v536
    %v540 = vadd.f32 %v539, %v537
    %v541 = vadd.f32 %v540, %v538
    %v542 = vadd.f32 %v530, %v541
    %543 = vst [vmem:[#allocation7 + $0x48] sm:$0xff] %v542
    %v544 = vld [vmem:[#allocation8 + $0x48] sm:$0xff]
    %v545 = vsel %vm526, %v249, 0.0
    %v546 = vsel %vm527, %v250, 0.0
    %v547 = vsel %vm528, %v251, 0.0
    %v548 = vsel %vm529, %v252, 0.0
    %v549 = vadd.f32 %v545, %v546
    %v550 = vadd.f32 %v549, %v547
    %v551 = vadd.f32 %v550, %v548
    %v552 = vadd.f32 %v544, %v551
    %553 = vst [vmem:[#allocation8 + $0x48] sm:$0xff] %v552
    %vm554 = vcmp.ge.f32.partialorder %v270, 10.0
    %vm555 = vcmp.ge.f32.partialorder %v271, 10.0
    %vm556 = vcmp.ge.f32.partialorder %v272, 10.0
    %vm557 = vcmp.ge.f32.partialorder %v273, 10.0
    %v558 = vld [vmem:[#allocation7 + $0x50] sm:$0xff]
    %v559 = vsel %vm554, 1, 0
    %v560 = vsel %vm555, 1, 0
    %v561 = vsel %vm556, 1, 0
    %v562 = vsel %vm557, 1, 0
    %v563 = vcvt.s32.f32 %v559
    %v564 = vcvt.s32.f32 %v560
    %v565 = vcvt.s32.f32 %v561
    %v566 = vcvt.s32.f32 %v562
    %v567 = vadd.f32 %v563, %v564
    %v568 = vadd.f32 %v567, %v565
    %v569 = vadd.f32 %v568, %v566
    %v570 = vadd.f32 %v558, %v569
    %571 = vst [vmem:[#allocation7 + $0x50] sm:$0xff] %v570
    %v572 = vld [vmem:[#allocation8 + $0x50] sm:$0xff]
    %v573 = vsel %vm554, %v249, 0.0
    %v574 = vsel %vm555, %v250, 0.0
    %v575 = vsel %vm556, %v251, 0.0
    %v576 = vsel %vm557, %v252, 0.0
    %v577 = vadd.f32 %v573, %v574
    %v578 = vadd.f32 %v577, %v575
    %v579 = vadd.f32 %v578, %v576
    %v580 = vadd.f32 %v572, %v579
    %581 = vst [vmem:[#allocation8 + $0x50] sm:$0xff] %v580
    // Predicated region
    $region22: #{tpu_custom_call.1} parent=1 // pred_check
      _
    $region23: #{tpu_custom_call.1} parent=1 // pred_check_branch
      %583 = sbr.rel (0) target = $region25
    $region24: #{tpu_custom_call.1} parent=1 // pred_region
      %585 = vsyncadd [#allocation4], 0
      %s586 = sshll.u32 [#allocation7], 4
      %s587 = int_to_ptr.vmem [resolvable:$true] %s586
      %s588 = sshll.u32 %s2, 4
      %s589 = int_to_ptr.hbm [resolvable:$true] %s588
      %594 = dma.vmem_to_hbm [thread:$0]  %s587, 1408, %s589, [#allocation4], 128, 128, 8
    $region25: #{tpu_custom_call.1} parent=1 // pred_fallthru
      _
    // Predicated region
    $region26: #{tpu_custom_call.1} parent=1 // pred_check
      _
    $region27: #{tpu_custom_call.1} parent=1 // pred_check_branch
      %596 = sbr.rel (0) target = $region29
    $region28: #{tpu_custom_call.1} parent=1 // pred_region
      %598 = vsyncadd [#allocation9], 0
      %s599 = sshll.u32 [#allocation8], 4
      %s600 = int_to_ptr.vmem [resolvable:$true] %s599
      %s601 = sshll.u32 %s3, 4
      %s602 = int_to_ptr.hbm [resolvable:$true] %s601
      %607 = dma.vmem_to_hbm [thread:$0]  %s600, 1408, %s602, [#allocation9], 128, 128, 8
    $region29: #{tpu_custom_call.1} parent=1 // pred_fallthru
      _
    // Predicated region
    $region30: #{tpu_custom_call.1} parent=1 // pred_check
      _
    $region31: #{tpu_custom_call.1} parent=1 // pred_check_branch
      %609 = sbr.rel (0) target = $region33
    $region32: #{tpu_custom_call.1} parent=1 // pred_region
      %611 = dma.done [#allocation4], 1408
    $region33: #{tpu_custom_call.1} parent=1 // pred_fallthru
      _
    // Predicated region
    $region34: #{tpu_custom_call.1} parent=1 // pred_check
      _
    $region35: #{tpu_custom_call.1} parent=1 // pred_check_branch
      %613 = sbr.rel (0) target = $region37
    $region36: #{tpu_custom_call.1} parent=1 // pred_region
      %615 = dma.done [#allocation9], 1408
    $region37: #{tpu_custom_call.1} parent=1 // pred_fallthru
      _
    %616 = vsyncpa [#allocation3], 1
    %617 = vsyncpa [#allocation6], 1
    %618 = vsyncpa [#allocation4], 1
    %619 = vsyncpa [#allocation9], 1

</llo_original>
